<compile_context>
chip_gen: v7x
topology: tpu7x:2x2x1
jax: 0.10.0
libtpu: 0.0.40
codegen_flags: <defaults>
</compile_context>

<pallas_src>
import jax
import jax.numpy as jnp
from jax.experimental import pallas as pl
from jax.experimental.pallas import tpu as pltpu

_MIB = 1024 * 1024


def _round_down(x, m):
    return (x // m) * m


def _tpu_budgets():
    """Return (tile_bytes_target, vmem_limit_bytes, is_v7x_class)."""
    vmem_cap = None
    try:
        info = pltpu.get_tpu_info()
        for attr in ("vmem_capacity_bytes", "vmem_bytes", "vmem_size_bytes"):
            v = getattr(info, attr, None)
            if isinstance(v, int) and v > 0:
                vmem_cap = v
                break
    except Exception:
        vmem_cap = None

    if vmem_cap is not None and vmem_cap <= 96 * _MIB:
        # v7x-class (64 MiB VMEM per TC, ~3.2 TB/s HBM): bigger tiles amortize
        # the fixed per-grid-step overhead; 4 x 6 MiB live stays far under
        # both the raised scoped limit and physical VMEM.
        return 6 * _MIB, 40 * _MIB, True
    if vmem_cap is not None:
        # v5e / v6e (128 MiB VMEM): 3 MiB tiles -> ~12 MiB live; the explicit
        # limit covers it even against v5e's 16 MiB default scoped budget.
        return 3 * _MIB, 32 * _MIB, False
    # Unknown hardware: conservative.
    return 2 * _MIB, 24 * _MIB, False


def _choose_blocks(rows, cols, itemsize, tile_bytes, split_for_two_cores):
    """Pick (r_tile, l_tile) jointly against the per-tile byte budget.

    Each block dim is either a multiple of (8 | 128) or equal to the full
    array extent; remainders are handled by ceil-division grids with partial
    edge blocks (never a single oversized fallback block).
    """
    # Lane axis: widest lane-dense tile such that even a minimal 8-row tile
    # fits the byte budget.
    lane_budget = max(128, _round_down(tile_bytes // (8 * itemsize), 128))
    if cols <= lane_budget:
        l_tile = cols                  # full extent (legal for any size)
    else:
        l_tile = lane_budget           # 128-multiple; edge block is partial

    # Row axis: fill the remaining budget.
    row_budget = max(8, _round_down(tile_bytes // max(1, l_tile * itemsize), 8))
    if rows <= 8:
        r_tile = rows                  # full extent
    else:
        r_tile = min(row_budget, _round_down(rows, 8))

    # v7x has two TensorCores: make sure the parallel grid has >= 2 steps for
    # anything big enough to be worth sharding across them.
    if split_for_two_cores:
        n_steps = ((rows + r_tile - 1) // r_tile) * ((cols + l_tile - 1) // l_tile)
        if n_steps == 1 and rows * cols * itemsize >= 512 * 1024:
            if rows >= 16:
                r_tile = max(8, _round_down((rows + 1) // 2, 8))
            elif cols >= 256:
                l_tile = max(128, _round_down((cols + 1) // 2, 128))
    return r_tile, l_tile


def _normalization_kernel(sb_ref, img_ref, out_ref):
    # sb: (r_tile, 2) f32 where [:, 0] = 1/std and [:, 1] = -mean/std.
    # Body is a single broadcast FMA; compute in f32 (no-op for f32 inputs,
    # matches the PyTorch f32 mean/std buffers for lower-precision inputs).
    sb = sb_ref[...]
    scale = sb[:, 0:1]
    bias = sb[:, 1:2]
    x = img_ref[...].astype(jnp.float32)
    out_ref[...] = (x * scale + bias).astype(out_ref.dtype)


def normalization(img, mean, std):
    """(img - mean.view(-1,1,1)) / std.view(-1,1,1) for NCHW img."""
    n, c, h, w = img.shape

    mean_f32 = jnp.asarray(mean, dtype=jnp.float32).reshape(c)
    std_f32 = jnp.asarray(std, dtype=jnp.float32).reshape(c)
    scale = 1.0 / std_f32              # (C,)
    bias = -mean_f32 / std_f32         # (C,)

    rows = n * c
    cols = h * w

    # Row r of the (rows, cols) view corresponds to channel r % C.  Fuse the
    # per-row scale and bias into one (rows, 2) f32 input (one lane-padded
    # VMEM buffer instead of two, fetched only when the row block changes).
    sb = jnp.stack([jnp.tile(scale, (n,)), jnp.tile(bias, (n,))], axis=1)

    x2d = img.reshape(rows, cols)      # zero-cost for contiguous NCHW

    itemsize = jnp.dtype(img.dtype).itemsize
    tile_bytes, vmem_limit, is_v7x = _tpu_budgets()
    r_tile, l_tile = _choose_blocks(rows, cols, itemsize, tile_bytes, is_v7x)
    grid = ((rows + r_tile - 1) // r_tile, (cols + l_tile - 1) // l_tile)

    cost = pl.CostEstimate(
        flops=2 * rows * cols,
        transcendentals=0,
        bytes_accessed=2 * rows * cols * itemsize + rows * 2 * 4,
    )

    out2d = pl.pallas_call(
        _normalization_kernel,
        out_shape=jax.ShapeDtypeStruct((rows, cols), img.dtype),
        grid_spec=pltpu.PrefetchScalarGridSpec(
            num_scalar_prefetch=0,
            grid=grid,
            in_specs=[
                # fused per-row (scale, bias) columns, broadcast in-kernel
                pl.BlockSpec((r_tile, 2), lambda i, j: (i, 0)),
                # lane-dense data tile
                pl.BlockSpec((r_tile, l_tile), lambda i, j: (i, j)),
            ],
            out_specs=pl.BlockSpec((r_tile, l_tile), lambda i, j: (i, j)),
        ),
        compiler_params=pltpu.CompilerParams(
            dimension_semantics=("parallel", "parallel"),
            vmem_limit_bytes=int(vmem_limit),
        ),
        cost_estimate=cost,
    )(sb, x2d)

    return out2d.reshape(n, c, h, w)


if __name__ == "__main__":
    key = jax.random.PRNGKey(0)

    # Primary small test: batch=2, channels=3 (RGB, VGG preprocessing), 16x16.
    N, C, H, W = 2, 3, 16, 16
    img = jax.random.uniform(key, (N, C, H, W), dtype=jnp.float32)
    mean = jnp.array([0.485, 0.456, 0.406], dtype=jnp.float32)
    std = jnp.array([0.229, 0.224, 0.225], dtype=jnp.float32)

    out = jax.block_until_ready(normalization(img, mean, std))
    ref = (img - mean.reshape(-1, 1, 1)) / std.reshape(-1, 1, 1)
    assert out.shape == img.shape
    # FMA reformulation (x * 1/std - mean/std) differs from (x - mean)/std by
    # ~1 ulp, so use a slightly relaxed tolerance.
    assert jnp.allclose(out, ref, atol=1e-5, rtol=1e-5)

    # Different channel count / spatial size.
    img2 = jax.random.uniform(jax.random.PRNGKey(1), (2, 4, 32, 32), dtype=jnp.float32)
    mean2 = jnp.array([0.1, 0.2, 0.3, 0.4], dtype=jnp.float32)
    std2 = jnp.array([0.5, 0.6, 0.7, 0.8], dtype=jnp.float32)
    out2 = jax.block_until_ready(normalization(img2, mean2, std2))
    ref2 = (img2 - mean2.reshape(-1, 1, 1)) / std2.reshape(-1, 1, 1)
    assert jnp.allclose(out2, ref2, atol=1e-5, rtol=1e-5)

    # Non-(8,128)-divisible row count (N*C = 10) -> exercises the ceil-division
    # grid with a partial edge block instead of a degenerate full-array block.
    img3 = jax.random.uniform(jax.random.PRNGKey(2), (2, 5, 16, 16), dtype=jnp.float32)
    mean3 = jnp.linspace(0.1, 0.5, 5).astype(jnp.float32)
    std3 = jnp.linspace(0.3, 0.9, 5).astype(jnp.float32)
    out3 = jax.block_until_ready(normalization(img3, mean3, std3))
    ref3 = (img3 - mean3.reshape(-1, 1, 1)) / std3.reshape(-1, 1, 1)
    assert jnp.allclose(out3, ref3, atol=1e-5, rtol=1e-5)

    print("KERNEL_OK")
</pallas_src>

<mosaic_0001>
module attributes {stable_mosaic.version = 11 : i64} {
  func.func @_normalization_kernel(%arg0: i32, %arg1: i32, %arg2: memref<6x2xf32, #tpu.memory_space<vmem>>, %arg3: memref<6x256xf32, #tpu.memory_space<vmem>>, %arg4: memref<6x256xf32, #tpu.memory_space<vmem>>) attributes {dimension_semantics = [#tpu.dimension_semantics<parallel>, #tpu.dimension_semantics<parallel>], iteration_bounds = array<i64: 1, 1>, scalar_prefetch = 0 : i64, scratch_operands = 0 : i64, tpu.core_type = #tpu.core_type<tc>, window_params = [{transform_indices = @transform_0, window_bounds = array<i64: 6, 2>}, {transform_indices = @transform_1, window_bounds = array<i64: 6, 256>}, {transform_indices = @transform_2, window_bounds = array<i64: 6, 256>}]} {
    %c0 = arith.constant 0 : index
    %c0_0 = arith.constant 0 : index
    %0 = vector.load %arg2[%c0, %c0_0] : memref<6x2xf32, #tpu.memory_space<vmem>>, vector<6x2xf32>
    %1 = vector.extract_strided_slice %0 {offsets = [0, 0], sizes = [6, 1], strides = [1, 1]} : vector<6x2xf32> to vector<6x1xf32>
    %2 = vector.extract_strided_slice %0 {offsets = [0, 1], sizes = [6, 1], strides = [1, 1]} : vector<6x2xf32> to vector<6x1xf32>
    %c0_1 = arith.constant 0 : index
    %c0_2 = arith.constant 0 : index
    %3 = vector.load %arg3[%c0_1, %c0_2] : memref<6x256xf32, #tpu.memory_space<vmem>>, vector<6x256xf32>
    %4 = vector.broadcast %1 : vector<6x1xf32> to vector<6x256xf32>
    %5 = arith.mulf %3, %4 : vector<6x256xf32>
    %6 = vector.broadcast %2 : vector<6x1xf32> to vector<6x256xf32>
    %7 = arith.addf %5, %6 : vector<6x256xf32>
    %c0_3 = arith.constant 0 : index
    %c0_4 = arith.constant 0 : index
    %8 = vector.load %arg4[%c0_3, %c0_4] : memref<6x256xf32, #tpu.memory_space<vmem>>, vector<6x256xf32>
    tpu.vector_store %arg4[%c0_3, %c0_4], %7 {strides = array<i32>} : memref<6x256xf32, #tpu.memory_space<vmem>>, vector<6x256xf32>,
    return
  }
  func.func @transform_0(%arg0: i32, %arg1: i32) -> (i32, i32) {
    %c0_i32 = arith.constant 0 : i32
    %c0_i32_0 = arith.constant 0 : i32
    return %arg0, %c0_i32 : i32, i32
  }
  func.func @transform_1(%arg0: i32, %arg1: i32) -> (i32, i32) {
    %c0_i32 = arith.constant 0 : i32
    return %arg0, %arg1 : i32, i32
  }
  func.func @transform_2(%arg0: i32, %arg1: i32) -> (i32, i32) {
    %c0_i32 = arith.constant 0 : i32
    return %arg0, %arg1 : i32, i32
  }
}

</mosaic_0001>

<llo_original>
// kernel: tpu_custom_call.1
$region0: #{tpu_custom_call.1}
  #allocation0 [shape = 'u32[]', space=smem, size = 0x4, offset = 0x4, fixed_abs, tag = 'smem constant byte address 0x4 - core index']
  #allocation1 [shape = 'u32[144,128]{1,0:T(1,128)}', space=vmem, size = 0x12000, scoped, tag = 'internal scratch']
  %s0 = inlined_call_operand.vmem [shape: f32[6,2], index: 0, kind: input, shape index: {}]
  %s1 = inlined_call_operand.hbm [shape: f32[6,256], index: 1, kind: input, shape index: {}]
  %s2 = inlined_call_operand.hbm [shape: f32[6,256], index: 2, kind: output, shape index: {}]
  %s3 = sld [smem:[#allocation0]]
  $region22: #{tpu_custom_call.1} parent=0
    _
  %s5 = ssub.s32 1, %s3
  %s6 = scalar_select 0, %s5, %s3
  $region1: #{tpu_custom_call.1} parent=0
    #allocation2 [shape = 'u8[8192]{0}', space=vmem, size = 0x2000, scoped, tag = 'input window, operand 1, single buffered']
    #allocation3 [shape = 's32[1]{0}', space=sflag, size = 0x4, scoped, tag = 'scoped memory for tpu_custom_call.1']
    #allocation4 [shape = 's32[1]{0}', space=sflag, size = 0x4, scoped, tag = 'scoped memory for tpu_custom_call.1']
    #allocation5 [shape = 'u8[8192]{0}', space=vmem, size = 0x2000, scoped, tag = 'output window, operand 0, single buffered']
    %7 = vsyncpa [#allocation3], 0
    %8 = vsyncpa [#allocation4], 0
    // Predicated region
    $region2: #{tpu_custom_call.1} parent=1 // pred_check
      _
    $region3: #{tpu_custom_call.1} parent=1 // pred_check_branch
      %10 = sbr.rel (0) target = $region5
    $region4: #{tpu_custom_call.1} parent=1 // pred_region
      _
    $region5: #{tpu_custom_call.1} parent=1 // pred_fallthru
      _
    // Predicated region
    $region6: #{tpu_custom_call.1} parent=1 // pred_check
      _
    $region7: #{tpu_custom_call.1} parent=1 // pred_check_branch
      %12 = sbr.rel (0) target = $region9
    $region8: #{tpu_custom_call.1} parent=1 // pred_region
      %s14 = ssub.s32 256, 256
      %15 = vsyncadd [#allocation3], %s14
      %s17 = sshll.u32 [#allocation2], 4
      %s18 = int_to_ptr.vmem [resolvable:$true] %s17
      %20 = dma.hbm_to_vmem [thread:$0]  %s1, 256, %s18, [#allocation3]
    $region9: #{tpu_custom_call.1} parent=1 // pred_fallthru
      _
    // Predicated region
    $region10: #{tpu_custom_call.1} parent=1 // pred_check
      _
    $region11: #{tpu_custom_call.1} parent=1 // pred_check_branch
      %22 = sbr.rel (0) target = $region13
    $region12: #{tpu_custom_call.1} parent=1 // pred_region
      %23 = dma.done [#allocation3], 256
    $region13: #{tpu_custom_call.1} parent=1 // pred_fallthru
      _
    %v24 = vld [vmem:[%s0] sm:$0x3f]
    %v25 = vld [vmem:[#allocation2] sm:$0x3f]
    %v26 = vld [vmem:[#allocation2 + $0x8] sm:$0x3f]
    %28 = vset.pattern.permute.xlu0 0
    %29 = vperm.xlu0 %28, %v24
    %v30 = vpop.permute.xlu0 %29
    %v32 = vmul.f32 %v25, %v30
    %v33 = vmul.f32 %v26, %v30
    %34 = vset.pattern.permute.xlu0 1
    %35 = vperm.xlu0 %34, %v24
    %v36 = vpop.permute.xlu0 %35
    %v38 = vadd.f32 %v32, %v36
    %v39 = vadd.f32 %v33, %v36
    %40 = vst [vmem:[#allocation5] sm:$0x3f] %v38
    %41 = vst [vmem:[#allocation5 + $0x8] sm:$0x3f] %v39
    // Predicated region
    $region14: #{tpu_custom_call.1} parent=1 // pred_check
      _
    $region15: #{tpu_custom_call.1} parent=1 // pred_check_branch
      %43 = sbr.rel (0) target = $region17
    $region16: #{tpu_custom_call.1} parent=1 // pred_region
      %s45 = ssub.s32 256, 256
      %46 = vsyncadd [#allocation4], %s45
      %s48 = sshll.u32 [#allocation5], 4
      %s49 = int_to_ptr.vmem [resolvable:$true] %s48
      %51 = dma.vmem_to_hbm [thread:$0]  %s49, 256, %s2, [#allocation4]
    $region17: #{tpu_custom_call.1} parent=1 // pred_fallthru
      _
    // Predicated region
    $region18: #{tpu_custom_call.1} parent=1 // pred_check
      _
    $region19: #{tpu_custom_call.1} parent=1 // pred_check_branch
      %53 = sbr.rel (0) target = $region21
    $region20: #{tpu_custom_call.1} parent=1 // pred_region
      %54 = dma.done [#allocation4], 256
    $region21: #{tpu_custom_call.1} parent=1 // pred_fallthru
      _
    %55 = vsyncpa [#allocation3], 1
    %56 = vsyncpa [#allocation4], 1

</llo_original>
